<compile_context>
chip_gen: v7x
topology: tpu7x:2x2x1
jax: 0.10.0
libtpu: 0.0.40
codegen_flags: <defaults>
</compile_context>

<pallas_src>
import jax
import jax.numpy as jnp
import numpy as np
from jax.experimental import pallas as pl
from jax.experimental.pallas import tpu as pltpu

_LOG_EPS = float(np.log(1e-30))   # index_to_log_onehot "zero" log-prob


# ----------------------------------------------------------------------------
# Fused kernel: predict_start -> multinomial_kl -> log_sample_categorical
# Kernel tiles (first dim squeezed by the BlockSpec):
#   logx_ref:   (C, LT)   gumbel_ref: (C, LT)   temb_ref: (D, 1)
#   wembT_ref:  (D, C)    woutT_ref:  (C, D)    b_ref:    (C, 1)
#   recon_ref:  (C, LT)   kl_ref:     (1, LT)   sample_ref: (C, LT)
# ----------------------------------------------------------------------------
def fused_diffusion_kernel(logx_ref, temb_ref, gumbel_ref,
                           wembT_ref, woutT_ref, b_ref,
                           recon_ref, kl_ref, sample_ref):
    C = recon_ref.shape[0]
    lx = logx_ref[...]                                        # (C, LT)
    iota_c = jax.lax.broadcasted_iota(jnp.int32, lx.shape, 0)

    # ---- log_onehot_to_index + one_hot fused (argmax over classes, axis 0) --
    maxv = jnp.max(lx, axis=0, keepdims=True)
    idx = jnp.min(jnp.where(lx >= maxv, iota_c, C), axis=0, keepdims=True)
    x_onehot = (iota_c == idx).astype(jnp.float32)            # (C, LT)

    # ---- transformer stub: token emb + timestep emb + output projection -----
    h = jnp.dot(wembT_ref[...], x_onehot,
                preferred_element_type=jnp.float32)           # (D, LT)
    h = h + temb_ref[...]                                     # (D, 1) broadcast
    logits = jnp.dot(woutT_ref[...], h,
                     preferred_element_type=jnp.float32)      # (C, LT)
    logits = logits + b_ref[...]                              # (C, 1) broadcast

    # ---- predict_start: drop mask class, log_softmax over classes, -70 row --
    is_mask_row = iota_c == (C - 1)
    lg = jnp.where(is_mask_row, -jnp.inf, logits)             # exclude mask cls
    m = jnp.max(lg, axis=0, keepdims=True)
    p = jnp.exp(lg - m)                                       # mask row -> 0
    s = jnp.sum(p, axis=0, keepdims=True)
    log_pred = lg - m - jnp.log(s)
    log_recon = jnp.clip(jnp.where(is_mask_row, -70.0, log_pred), -70.0, 0.0)
    recon_ref[...] = log_recon                                # full-lane vst

    # ---- multinomial_kl(log_x_recon, log_x_t): reuse exp(lg-m)/s ------------
    # (mask-row term exp(-70)*(-70 - lx) ~ 4e-31 is dropped; numerically nil.)
    probs = p / s
    kl_ref[...] = jnp.sum(probs * (log_recon - lx),
                          axis=0, keepdims=True)              # (1, LT)

    # ---- log_sample_categorical(log_x_recon) with supplied Gumbel noise -----
    z = gumbel_ref[...] + log_recon
    zmax = jnp.max(z, axis=0, keepdims=True)
    zidx = jnp.min(jnp.where(z >= zmax, iota_c, C), axis=0, keepdims=True)
    sample_ref[...] = jnp.where(iota_c == zidx,
                                jnp.float32(0.0),
                                jnp.float32(_LOG_EPS))        # pure VPU select


# ----------------------------------------------------------------------------
# Helpers
# ----------------------------------------------------------------------------
def index_to_log_onehot(idx, num_classes):
    onehot = jax.nn.one_hot(idx, num_classes, axis=1, dtype=jnp.float32)
    return jnp.log(jnp.clip(onehot, 1e-30, 1.0))


def _pick_lane_tile(s_padded, num_classes, tile_vmem_budget=24 * 1024 * 1024):
    """Largest lane tile (<=1024, multiple of 128) dividing s_padded that keeps
    the double-buffered in/out block footprint under the VMEM budget."""
    per_lane_bytes = 2 * 4 * (2 * num_classes + (2 * num_classes + 1))
    max_lt = max(128, (tile_vmem_budget // per_lane_bytes) // 128 * 128)
    for cand in (1024, 512, 256, 128):
        if cand <= max_lt and s_padded % cand == 0:
            return cand
    return min(s_padded, max_lt)


# ----------------------------------------------------------------------------
# Wrapper
# ----------------------------------------------------------------------------
class MaskAndReplaceDiffusionPallas:
    def __init__(self, num_classes, max_token_length, num_timesteps=100,
                 dim_model=32, seed=0):
        self.num_classes = num_classes
        self.max_token_length = max_token_length
        self.num_timesteps = num_timesteps
        self.dim_model = dim_model

        key = jax.random.PRNGKey(seed)
        k1, k2, k3, k4 = jax.random.split(key, 4)
        C, D, T = num_classes, dim_model, num_timesteps
        scale = 0.1
        self.W_emb = scale * jax.random.normal(k1, (C, D), jnp.float32)
        self.time_emb = scale * jax.random.normal(k2, (T, D), jnp.float32)
        self.W_out = scale * jax.random.normal(k3, (D, C), jnp.float32)
        self.b_out = scale * jax.random.normal(k4, (1, C), jnp.float32)
        # pre-transposed weights for the classes-on-sublanes kernel orientation
        self.W_embT = jnp.asarray(self.W_emb.T)      # (D, C)
        self.W_outT = jnp.asarray(self.W_out.T)      # (C, D)
        self.b_col = jnp.asarray(self.b_out.reshape(C, 1))
        # unused-in-compute buffers kept for parity with the module
        self.Lt_history = jnp.zeros((T,), jnp.float32)
        self.Lt_count = jnp.zeros((T,), jnp.float32)

    def make_gumbel_noise(self, key, shape):
        # Exactly the reference formula: -log(-log(u + 1e-30) + 1e-30)
        u = jax.random.uniform(key, shape, dtype=jnp.float32)
        return -jnp.log(-jnp.log(u + 1e-30) + 1e-30)

    def diffusion_step(self, log_x_t, t, noise_key):
        """Fused: log_x_recon = predict_start(log_x_t, t),
                  kl          = multinomial_kl(log_x_recon, log_x_t),
                  log_sample  = log_sample_categorical(log_x_recon)."""
        B, C, S = log_x_t.shape
        D = self.dim_model
        Sp = ((S + 127) // 128) * 128                # pad lanes to mult. of 128

        gumbel = self.make_gumbel_noise(noise_key, (B, C, S))
        lx = log_x_t
        if Sp != S:
            lx = jnp.pad(lx, ((0, 0), (0, 0), (0, Sp - S)))
            gumbel = jnp.pad(gumbel, ((0, 0), (0, 0), (0, Sp - S)))

        # per-batch timestep embedding, broadcast across lanes in-kernel
        temb = jnp.take(self.time_emb, t, axis=0).reshape(B, D, 1)

        LT = _pick_lane_tile(Sp, C)
        grid = (B, Sp // LT)

        recon, kl, sample = pl.pallas_call(
            fused_diffusion_kernel,
            out_shape=(
                jax.ShapeDtypeStruct((B, C, Sp), jnp.float32),
                jax.ShapeDtypeStruct((B, 1, Sp), jnp.float32),
                jax.ShapeDtypeStruct((B, C, Sp), jnp.float32),
            ),
            grid_spec=pltpu.PrefetchScalarGridSpec(
                num_scalar_prefetch=0,
                grid=grid,
                in_specs=[
                    pl.BlockSpec((None, C, LT), lambda b, s: (b, 0, s)),
                    pl.BlockSpec((None, D, 1), lambda b, s: (b, 0, 0)),
                    pl.BlockSpec((None, C, LT), lambda b, s: (b, 0, s)),
                    pl.BlockSpec((D, C), lambda b, s: (0, 0)),
                    pl.BlockSpec((C, D), lambda b, s: (0, 0)),
                    pl.BlockSpec((C, 1), lambda b, s: (0, 0)),
                ],
                out_specs=[
                    pl.BlockSpec((None, C, LT), lambda b, s: (b, 0, s)),
                    pl.BlockSpec((None, 1, LT), lambda b, s: (b, 0, s)),
                    pl.BlockSpec((None, C, LT), lambda b, s: (b, 0, s)),
                ],
            ),
            compiler_params=pltpu.CompilerParams(
                dimension_semantics=("parallel", "parallel"),
                vmem_limit_bytes=48 * 1024 * 1024),
        )(lx, temb, gumbel, self.W_embT, self.W_outT, self.b_col)

        log_x_recon = recon[:, :, :S]
        kl = kl[:, 0, :S]
        log_sample = sample[:, :, :S]
        return log_x_recon, kl, log_sample


# ----------------------------------------------------------------------------
# Pure-JAX references (for correctness checks only)
# ----------------------------------------------------------------------------
def predict_start_ref(log_x_t, t_emb, W_emb, W_out, b_out):
    B, C, S = log_x_t.shape
    idx = jnp.argmax(log_x_t, axis=1)                      # (B, S)
    onehot = jax.nn.one_hot(idx, C, dtype=jnp.float32)     # (B, S, C)
    h = onehot @ W_emb + t_emb                             # (B, S, D)
    logits = h @ W_out + b_out                             # (B, S, C)
    out = jnp.transpose(logits[..., : C - 1], (0, 2, 1))   # (B, C-1, S)
    lp = jax.nn.log_softmax(out, axis=1)
    lp = jnp.concatenate(
        [lp, jnp.full((B, 1, S), -70.0, jnp.float32)], axis=1)
    return jnp.clip(lp, -70.0, 0.0)


def multinomial_kl_ref(lp1, lp2):
    return jnp.sum(jnp.exp(lp1) * (lp1 - lp2), axis=1)


# ----------------------------------------------------------------------------
if __name__ == "__main__":
    B, C, S, D, T = 2, 8, 128, 32, 100   # batch, num_classes, max_token_length,
                                         # dim_model, num_timesteps

    model = MaskAndReplaceDiffusionPallas(
        num_classes=C, max_token_length=S, num_timesteps=T, dim_model=D, seed=0)

    key = jax.random.PRNGKey(0)
    k_idx, k_t, k_noise = jax.random.split(key, 3)

    # noisy categorical state x_t as log one-hot (B, C, S)
    x_t_idx = jax.random.randint(k_idx, (B, S), 0, C)
    log_x_t = index_to_log_onehot(x_t_idx, C)
    t = jax.random.randint(k_t, (B,), 0, T)

    # --- run the fused Pallas kernel --------------------------------------
    log_x_recon, kl, log_sample = model.diffusion_step(log_x_t, t, k_noise)
    jax.block_until_ready((log_x_recon, kl, log_sample))

    # --- sanity checks against pure-JAX references -------------------------
    t_emb = jnp.take(model.time_emb, t, axis=0)[:, None, :]
    ref_recon = predict_start_ref(log_x_t, t_emb, model.W_emb,
                                  model.W_out, model.b_out)
    ref_kl = multinomial_kl_ref(ref_recon, log_x_t)

    np.testing.assert_allclose(np.asarray(log_x_recon), np.asarray(ref_recon),
                               rtol=1e-4, atol=1e-4)
    np.testing.assert_allclose(np.asarray(kl), np.asarray(ref_kl),
                               rtol=1e-4, atol=1e-4)

    # gumbel sample: same noise regenerated host-side -> exact index agreement
    gumbel = model.make_gumbel_noise(k_noise, (B, C, S))
    ref_sample_idx = jnp.argmax(gumbel + log_x_recon, axis=1)
    kernel_sample_idx = jnp.argmax(log_sample, axis=1)
    assert np.array_equal(np.asarray(ref_sample_idx),
                          np.asarray(kernel_sample_idx))

    ls = np.asarray(log_sample)
    assert ls.shape == (B, C, S)
    assert np.all(np.isclose(ls.max(axis=1), 0.0))            # argmax class -> log 1
    assert np.all((ls == 0.0).sum(axis=1) == 1)               # exactly one class
    assert np.all(np.isclose(ls.min(axis=1), np.log(1e-30)))  # rest are log eps

    print("KERNEL_OK")
</pallas_src>

<mosaic_0001>
module attributes {stable_mosaic.version = 11 : i64} {
  func.func @fused_diffusion_kernel(%arg0: i32, %arg1: i32, %arg2: memref<1x8x128xf32, #tpu.memory_space<vmem>>, %arg3: memref<1x32x1xf32, #tpu.memory_space<vmem>>, %arg4: memref<1x8x128xf32, #tpu.memory_space<vmem>>, %arg5: memref<32x8xf32, #tpu.memory_space<vmem>>, %arg6: memref<8x32xf32, #tpu.memory_space<vmem>>, %arg7: memref<8x1xf32, #tpu.memory_space<vmem>>, %arg8: memref<1x8x128xf32, #tpu.memory_space<vmem>>, %arg9: memref<1x1x128xf32, #tpu.memory_space<vmem>>, %arg10: memref<1x8x128xf32, #tpu.memory_space<vmem>>) attributes {dimension_semantics = [#tpu.dimension_semantics<parallel>, #tpu.dimension_semantics<parallel>], iteration_bounds = array<i64: 2, 1>, scalar_prefetch = 0 : i64, scratch_operands = 0 : i64, tpu.core_type = #tpu.core_type<tc>, window_params = [{transform_indices = @transform_0, window_bounds = array<i64: 1, 8, 128>}, {transform_indices = @transform_1, window_bounds = array<i64: 1, 32, 1>}, {transform_indices = @transform_2, window_bounds = array<i64: 1, 8, 128>}, {pipeline_mode = #tpu.pipeline_mode<synchronous>, transform_indices = @transform_3, window_bounds = array<i64: 32, 8>}, {pipeline_mode = #tpu.pipeline_mode<synchronous>, transform_indices = @transform_4, window_bounds = array<i64: 8, 32>}, {pipeline_mode = #tpu.pipeline_mode<synchronous>, transform_indices = @transform_5, window_bounds = array<i64: 8, 1>}, {transform_indices = @transform_6, window_bounds = array<i64: 1, 8, 128>}, {transform_indices = @transform_7, window_bounds = array<i64: 1, 1, 128>}, {transform_indices = @transform_8, window_bounds = array<i64: 1, 8, 128>}]} {
    %c0 = arith.constant 0 : index
    %c0_0 = arith.constant 0 : index
    %c0_1 = arith.constant 0 : index
    %0 = vector.load %arg2[%c0, %c0_0, %c0_1] : memref<1x8x128xf32, #tpu.memory_space<vmem>>, vector<1x8x128xf32>
    %1 = vector.shape_cast %0 : vector<1x8x128xf32> to vector<8x128xf32>
    %2 = tpu.iota {dimensions = array<i32: 0>} : vector<8x128xi32>
    %cst = arith.constant dense<0xFF800000> : vector<128xf32>
    %3 = vector.multi_reduction <maximumf>, %1, %cst [0] : vector<8x128xf32> to vector<128xf32>
    %4 = vector.shape_cast %3 : vector<128xf32> to vector<1x128xf32>
    %5 = vector.broadcast %4 : vector<1x128xf32> to vector<8x128xf32>
    %6 = arith.cmpf oge, %1, %5 : vector<8x128xf32>
    %c8_i32 = arith.constant 8 : i32
    %7 = vector.broadcast %c8_i32 : i32 to vector<8x128xi32>
    %8 = arith.select %6, %2, %7 : vector<8x128xi1>, vector<8x128xi32>
    %cst_2 = arith.constant dense<2147483647> : vector<128xi32>
    %9 = vector.multi_reduction <minsi>, %8, %cst_2 [0] : vector<8x128xi32> to vector<128xi32>
    %10 = vector.shape_cast %9 : vector<128xi32> to vector<1x128xi32>
    %11 = vector.broadcast %10 : vector<1x128xi32> to vector<8x128xi32>
    %12 = arith.cmpi eq, %2, %11 : vector<8x128xi32>
    %13 = arith.extui %12 : vector<8x128xi1> to vector<8x128xi32>
    %14 = arith.sitofp %13 : vector<8x128xi32> to vector<8x128xf32>
    %c0_3 = arith.constant 0 : index
    %c0_4 = arith.constant 0 : index
    %15 = vector.load %arg5[%c0_3, %c0_4] : memref<32x8xf32, #tpu.memory_space<vmem>>, vector<32x8xf32>
    %cst_5 = arith.constant dense<0.000000e+00> : vector<32x128xf32>
    %16 = tpu.matmul %15, %14, %cst_5 {dimension_numbers = #tpu.dot_dimension_numbers<[1], [0], [0], [1], [0, 0, 1, 1], [], []>} : vector<32x8xf32>, vector<8x128xf32>, vector<32x128xf32> -> vector<32x128xf32>
    %c0_6 = arith.constant 0 : index
    %c0_7 = arith.constant 0 : index
    %c0_8 = arith.constant 0 : index
    %17 = vector.load %arg3[%c0_6, %c0_7, %c0_8] : memref<1x32x1xf32, #tpu.memory_space<vmem>>, vector<1x32x1xf32>
    %18 = vector.shape_cast %17 : vector<1x32x1xf32> to vector<32x1xf32>
    %19 = vector.broadcast %18 : vector<32x1xf32> to vector<32x128xf32>
    %20 = arith.addf %16, %19 : vector<32x128xf32>
    %c0_9 = arith.constant 0 : index
    %c0_10 = arith.constant 0 : index
    %21 = vector.load %arg6[%c0_9, %c0_10] : memref<8x32xf32, #tpu.memory_space<vmem>>, vector<8x32xf32>
    %cst_11 = arith.constant dense<0.000000e+00> : vector<8x128xf32>
    %22 = tpu.matmul %21, %20, %cst_11 {dimension_numbers = #tpu.dot_dimension_numbers<[1], [0], [0], [1], [0, 0, 1, 1], [], []>} : vector<8x32xf32>, vector<32x128xf32>, vector<8x128xf32> -> vector<8x128xf32>
    %c0_12 = arith.constant 0 : index
    %c0_13 = arith.constant 0 : index
    %23 = vector.load %arg7[%c0_12, %c0_13] : memref<8x1xf32, #tpu.memory_space<vmem>>, vector<8x1xf32>
    %24 = vector.broadcast %23 : vector<8x1xf32> to vector<8x128xf32>
    %25 = arith.addf %22, %24 : vector<8x128xf32>
    %c7_i32 = arith.constant 7 : i32
    %26 = vector.broadcast %c7_i32 : i32 to vector<8x128xi32>
    %27 = arith.cmpi eq, %2, %26 : vector<8x128xi32>
    %cst_14 = arith.constant 0xFF800000 : f32
    %28 = vector.broadcast %cst_14 : f32 to vector<8x128xf32>
    %29 = arith.select %27, %28, %25 : vector<8x128xi1>, vector<8x128xf32>
    %cst_15 = arith.constant dense<0xFF800000> : vector<128xf32>
    %30 = vector.multi_reduction <maximumf>, %29, %cst_15 [0] : vector<8x128xf32> to vector<128xf32>
    %31 = vector.shape_cast %30 : vector<128xf32> to vector<1x128xf32>
    %32 = vector.broadcast %31 : vector<1x128xf32> to vector<8x128xf32>
    %33 = arith.subf %29, %32 : vector<8x128xf32>
    %34 = math.exp %33 : vector<8x128xf32>
    %cst_16 = arith.constant dense<0.000000e+00> : vector<128xf32>
    %35 = vector.multi_reduction <add>, %34, %cst_16 [0] : vector<8x128xf32> to vector<128xf32>
    %36 = vector.shape_cast %35 : vector<128xf32> to vector<1x128xf32>
    %37 = vector.broadcast %31 : vector<1x128xf32> to vector<8x128xf32>
    %38 = arith.subf %29, %37 : vector<8x128xf32>
    %39 = math.log %36 : vector<1x128xf32>
    %40 = vector.broadcast %39 : vector<1x128xf32> to vector<8x128xf32>
    %41 = arith.subf %38, %40 : vector<8x128xf32>
    %cst_17 = arith.constant -7.000000e+01 : f32
    %42 = vector.broadcast %cst_17 : f32 to vector<8x128xf32>
    %43 = arith.select %27, %42, %41 : vector<8x128xi1>, vector<8x128xf32>
    %cst_18 = arith.constant -7.000000e+01 : f32
    %cst_19 = arith.constant 0.000000e+00 : f32
    %44 = vector.broadcast %cst_18 : f32 to vector<8x128xf32>
    %45 = arith.maximumf %44, %43 : vector<8x128xf32>
    %46 = vector.broadcast %cst_19 : f32 to vector<8x128xf32>
    %47 = arith.minimumf %46, %45 : vector<8x128xf32>
    %c0_20 = arith.constant 0 : index
    %c0_21 = arith.constant 0 : index
    %c0_22 = arith.constant 0 : index
    %48 = vector.load %arg8[%c0_20, %c0_21, %c0_22] : memref<1x8x128xf32, #tpu.memory_space<vmem>>, vector<1x8x128xf32>
    %49 = vector.shape_cast %48 : vector<1x8x128xf32> to vector<8x128xf32>
    %50 = vector.shape_cast %47 : vector<8x128xf32> to vector<1x8x128xf32>
    tpu.vector_store %arg8[%c0_20, %c0_21, %c0_22], %50 {strides = array<i32>} : memref<1x8x128xf32, #tpu.memory_space<vmem>>, vector<1x8x128xf32>,
    %51 = vector.broadcast %36 : vector<1x128xf32> to vector<8x128xf32>
    %52 = arith.divf %34, %51 : vector<8x128xf32>
    %53 = arith.subf %47, %1 : vector<8x128xf32>
    %54 = arith.mulf %52, %53 : vector<8x128xf32>
    %cst_23 = arith.constant dense<0.000000e+00> : vector<128xf32>
    %55 = vector.multi_reduction <add>, %54, %cst_23 [0] : vector<8x128xf32> to vector<128xf32>
    %56 = vector.shape_cast %55 : vector<128xf32> to vector<1x128xf32>
    %c0_24 = arith.constant 0 : index
    %c0_25 = arith.constant 0 : index
    %c0_26 = arith.constant 0 : index
    %57 = vector.load %arg9[%c0_24, %c0_25, %c0_26] : memref<1x1x128xf32, #tpu.memory_space<vmem>>, vector<1x1x128xf32>
    %58 = vector.shape_cast %57 : vector<1x1x128xf32> to vector<1x128xf32>
    %59 = vector.shape_cast %56 : vector<1x128xf32> to vector<1x1x128xf32>
    tpu.vector_store %arg9[%c0_24, %c0_25, %c0_26], %59 {strides = array<i32>} : memref<1x1x128xf32, #tpu.memory_space<vmem>>, vector<1x1x128xf32>,
    %c0_27 = arith.constant 0 : index
    %c0_28 = arith.constant 0 : index
    %c0_29 = arith.constant 0 : index
    %60 = vector.load %arg4[%c0_27, %c0_28, %c0_29] : memref<1x8x128xf32, #tpu.memory_space<vmem>>, vector<1x8x128xf32>
    %61 = vector.shape_cast %60 : vector<1x8x128xf32> to vector<8x128xf32>
    %62 = arith.addf %61, %47 : vector<8x128xf32>
    %cst_30 = arith.constant dense<0xFF800000> : vector<128xf32>
    %63 = vector.multi_reduction <maximumf>, %62, %cst_30 [0] : vector<8x128xf32> to vector<128xf32>
    %64 = vector.shape_cast %63 : vector<128xf32> to vector<1x128xf32>
    %65 = vector.broadcast %64 : vector<1x128xf32> to vector<8x128xf32>
    %66 = arith.cmpf oge, %62, %65 : vector<8x128xf32>
    %c8_i32_31 = arith.constant 8 : i32
    %67 = vector.broadcast %c8_i32_31 : i32 to vector<8x128xi32>
    %68 = arith.select %66, %2, %67 : vector<8x128xi1>, vector<8x128xi32>
    %cst_32 = arith.constant dense<2147483647> : vector<128xi32>
    %69 = vector.multi_reduction <minsi>, %68, %cst_32 [0] : vector<8x128xi32> to vector<128xi32>
    %70 = vector.shape_cast %69 : vector<128xi32> to vector<1x128xi32>
    %71 = vector.broadcast %70 : vector<1x128xi32> to vector<8x128xi32>
    %72 = arith.cmpi eq, %2, %71 : vector<8x128xi32>
    %cst_33 = arith.constant 0.000000e+00 : f32
    %cst_34 = arith.constant -69.0775528 : f32
    %73 = vector.broadcast %cst_33 : f32 to vector<8x128xf32>
    %74 = vector.broadcast %cst_34 : f32 to vector<8x128xf32>
    %75 = arith.select %72, %73, %74 : vector<8x128xi1>, vector<8x128xf32>
    %c0_35 = arith.constant 0 : index
    %c0_36 = arith.constant 0 : index
    %c0_37 = arith.constant 0 : index
    %76 = vector.load %arg10[%c0_35, %c0_36, %c0_37] : memref<1x8x128xf32, #tpu.memory_space<vmem>>, vector<1x8x128xf32>
    %77 = vector.shape_cast %76 : vector<1x8x128xf32> to vector<8x128xf32>
    %78 = vector.shape_cast %75 : vector<8x128xf32> to vector<1x8x128xf32>
    tpu.vector_store %arg10[%c0_35, %c0_36, %c0_37], %78 {strides = array<i32>} : memref<1x8x128xf32, #tpu.memory_space<vmem>>, vector<1x8x128xf32>,
    return
  }
  func.func @transform_0(%arg0: i32, %arg1: i32) -> (i32, i32, i32) {
    %c0_i32 = arith.constant 0 : i32
    %c0_i32_0 = arith.constant 0 : i32
    return %arg0, %c0_i32, %arg1 : i32, i32, i32
  }
  func.func @transform_1(%arg0: i32, %arg1: i32) -> (i32, i32, i32) {
    %c0_i32 = arith.constant 0 : i32
    %c0_i32_0 = arith.constant 0 : i32
    %c0_i32_1 = arith.constant 0 : i32
    return %arg0, %c0_i32, %c0_i32_0 : i32, i32, i32
  }
  func.func @transform_2(%arg0: i32, %arg1: i32) -> (i32, i32, i32) {
    %c0_i32 = arith.constant 0 : i32
    %c0_i32_0 = arith.constant 0 : i32
    return %arg0, %c0_i32, %arg1 : i32, i32, i32
  }
  func.func @transform_3(%arg0: i32, %arg1: i32) -> (i32, i32) {
    %c0_i32 = arith.constant 0 : i32
    %c0_i32_0 = arith.constant 0 : i32
    %c0_i32_1 = arith.constant 0 : i32
    return %c0_i32, %c0_i32_0 : i32, i32
  }
  func.func @transform_4(%arg0: i32, %arg1: i32) -> (i32, i32) {
    %c0_i32 = arith.constant 0 : i32
    %c0_i32_0 = arith.constant 0 : i32
    %c0_i32_1 = arith.constant 0 : i32
    return %c0_i32, %c0_i32_0 : i32, i32
  }
  func.func @transform_5(%arg0: i32, %arg1: i32) -> (i32, i32) {
    %c0_i32 = arith.constant 0 : i32
    %c0_i32_0 = arith.constant 0 : i32
    %c0_i32_1 = arith.constant 0 : i32
    return %c0_i32, %c0_i32_0 : i32, i32
  }
  func.func @transform_6(%arg0: i32, %arg1: i32) -> (i32, i32, i32) {
    %c0_i32 = arith.constant 0 : i32
    %c0_i32_0 = arith.constant 0 : i32
    return %arg0, %c0_i32, %arg1 : i32, i32, i32
  }
  func.func @transform_7(%arg0: i32, %arg1: i32) -> (i32, i32, i32) {
    %c0_i32 = arith.constant 0 : i32
    %c0_i32_0 = arith.constant 0 : i32
    return %arg0, %c0_i32, %arg1 : i32, i32, i32
  }
  func.func @transform_8(%arg0: i32, %arg1: i32) -> (i32, i32, i32) {
    %c0_i32 = arith.constant 0 : i32
    %c0_i32_0 = arith.constant 0 : i32
    return %arg0, %c0_i32, %arg1 : i32, i32, i32
  }
}

</mosaic_0001>

<llo_original>
// kernel: tpu_custom_call.1
$region0: #{tpu_custom_call.1}
  #allocation0 [shape = 'u32[]', space=smem, size = 0x4, offset = 0x4, fixed_abs, tag = 'smem constant byte address 0x4 - core index']
  #allocation1 [shape = 'u32[144,128]{1,0:T(1,128)}', space=vmem, size = 0x12000, scoped, tag = 'internal scratch']
  %s0 = inlined_call_operand.vmem [shape: f32[2,8,128], index: 0, kind: input, shape index: {}]
  %s1 = inlined_call_operand.vmem [shape: f32[2,32,1], index: 1, kind: input, shape index: {}]
  %s2 = inlined_call_operand.vmem [shape: f32[2,8,128], index: 2, kind: input, shape index: {}]
  %s3 = inlined_call_operand.vmem [shape: f32[32,8], index: 3, kind: input, shape index: {}]
  %s4 = inlined_call_operand.vmem [shape: f32[8,32], index: 4, kind: input, shape index: {}]
  %s5 = inlined_call_operand.vmem [shape: f32[8,1], index: 5, kind: input, shape index: {}]
  %s6 = inlined_call_operand.hbm [shape: f32[2,8,128], index: 6, kind: output, shape index: {0}]
  %s7 = inlined_call_operand.hbm [shape: f32[2,1,128], index: 7, kind: output, shape index: {1}]
  %s8 = inlined_call_operand.hbm [shape: f32[2,8,128], index: 8, kind: output, shape index: {2}]
  %9 = xla_tuple %s6, %s7, %s8
  %s10 = sld [smem:[#allocation0]]
  $region73: #{tpu_custom_call.1} parent=0
    _
  %s12 = ssub.s32 1, %s10
  %s13 = scalar_select 0, %s12, %s10
  $region1: #{tpu_custom_call.1} parent=0
    #allocation2 [shape = 'u8[8192]{0}', space=vmem, size = 0x2000, scoped, tag = 'output window, operand 0']
    #allocation3 [shape = 's32[2]{0}', space=sflag, size = 0x8, scoped, tag = 'scoped memory for tpu_custom_call.1']
    #allocation4 [shape = 'u8[1024]{0}', space=vmem, size = 0x400, scoped, tag = 'output window, operand 1']
    #allocation5 [shape = 's32[2]{0}', space=sflag, size = 0x8, scoped, tag = 'scoped memory for tpu_custom_call.1']
    #allocation6 [shape = 'u8[8192]{0}', space=vmem, size = 0x2000, scoped, tag = 'output window, operand 2']
    %14 = vsyncpa [#allocation3], 0
    %s15 = scalar_lea.sflag [#allocation3], 1
    %16 = vsyncpa %s15, 0
    %17 = vsyncpa [#allocation5], 0
    %s18 = scalar_lea.sflag [#allocation5], 1
    %19 = vsyncpa %s18, 0
    loop: start=0, step=1, limit=4
    $region2: #{tpu_custom_call.1} parent=1 // loop_pre_header
      _
    $region3: #{tpu_custom_call.1} parent=1 // loop_header
      %s21 = sphi 0, %s25
      %p22 = scmp.ge.s32.totalorder %s21, 4
      %s28 = sphi 0, %s40
      %s29 = sphi 0, %s36
      %s30 = sphi 0, %s28
      %s31 = sphi 0, %s29
      %s32 = sphi 0, %s30
      %s33 = sphi 0, %s31
      %s45 = sphi 0, %s47
      %s48 = sphi 0, %s45
      %s49 = sphi 0, %s48
      %s65 = sphi 0, %s49
      %s71 = sphi 0, %s73
      %s74 = sphi 0, %s71
      %s75 = sphi 0, %s74
      %s91 = sphi 0, %s75
      %s99 = sphi 0, %s101
      %s102 = sphi 0, %s99
      %s103 = sphi 0, %s102
      %s119 = sphi 0, %s103
      %s123 = sphi 0, %s123
      %s125 = sphi 0, %s123
      %s126 = sphi 0, %s125
      %s140 = sphi 0, %s126
      %s144 = sphi 0, %s144
      %s146 = sphi 0, %s144
      %s147 = sphi 0, %s146
      %s161 = sphi 0, %s147
      %s165 = sphi 0, %s165
      %s167 = sphi 0, %s165
      %s168 = sphi 0, %s167
      %s182 = sphi 0, %s168
      %s190 = sphi 0, %s192
      %s193 = sphi 0, %s190
      %s194 = sphi 0, %s193
      %s210 = sphi 0, %s194
      %s218 = sphi 0, %s220
      %s221 = sphi 0, %s218
      %s222 = sphi 0, %s221
      %s238 = sphi 0, %s222
      %s246 = sphi 0, %s248
      %s249 = sphi 0, %s246
      %s250 = sphi 0, %s249
      %s266 = sphi 0, %s250
    $region4: #{tpu_custom_call.1} parent=1 // loop_header_branch
      %24 = sbr.rel (%p22) target = $region8
    $region5: #{tpu_custom_call.1} parent=1 // loop_body
      %s26 = ssub.s32 %s21, 1
      %s27 = ssub.s32 %s21, 2
      %s34 = sadd.s32 1, %s29
      %p35 = scmp.ge.s32.totalorder %s34, 1
      %s36 = scalar_select %p35, 0, %s34
      %s37 = sadd.s32 1, %s28
      %s38 = scalar_select %p35, %s37, %s28
      %p39 = scmp.ge.s32.totalorder %s38, 2
      %s40 = scalar_select %p39, 0, %s38
      %s41 = ssub.s32 %s28, %s40
      %s42 = ssub.s32 %s29, %s36
      %s43 = sor.u32 %s41, %s42
      %p44 = scmp.eq.s32.totalorder %s43, 0
      %s46 = sadd.s32 %s45, 1
      %s47 = scalar_select %p44, %s45, %s46
      %p50 = pneg %p44
      %p51 = scmp.eq.s32.totalorder %s21, 1
      %p52 = por %p50, %p51
      %p53 = scmp.ne.s32.totalorder %s45, %s48
      %p54 = scmp.eq.s32.totalorder %s21, 0
      %p55 = por %p53, %p54
      %p56 = scmp.ne.s32.totalorder %s45, %s48
      %p57 = scmp.eq.s32.totalorder %s26, 1
      %p58 = por %p56, %p57
      %p59 = scmp.ne.s32.totalorder %s48, %s49
      %p60 = scmp.eq.s32.totalorder %s26, 0
      %p61 = por %p59, %p60
      %p62 = scmp.ne.s32.totalorder %s48, %s49
      %p63 = scmp.eq.s32.totalorder %s27, 1
      %p64 = por %p62, %p63
      %p66 = scmp.ne.s32.totalorder %s49, %s65
      %p67 = scmp.eq.s32.totalorder %s27, 0
      %p68 = por %p66, %p67
      %s69 = ssub.s32 %s28, %s40
      %p70 = scmp.eq.s32.totalorder %s69, 0
      %s72 = sadd.s32 %s71, 1
      %s73 = scalar_select %p70, %s71, %s72
      %p76 = pneg %p70
      %p77 = scmp.eq.s32.totalorder %s21, 1
      %p78 = por %p76, %p77
      %p79 = scmp.ne.s32.totalorder %s71, %s74
      %p80 = scmp.eq.s32.totalorder %s21, 0
      %p81 = por %p79, %p80
      %p82 = scmp.ne.s32.totalorder %s71, %s74
      %p83 = scmp.eq.s32.totalorder %s26, 1
      %p84 = por %p82, %p83
      %p85 = scmp.ne.s32.totalorder %s74, %s75
      %p86 = scmp.eq.s32.totalorder %s26, 0
      %p87 = por %p85, %p86
      %p88 = scmp.ne.s32.totalorder %s74, %s75
      %p89 = scmp.eq.s32.totalorder %s27, 1
      %p90 = por %p88, %p89
      %p92 = scmp.ne.s32.totalorder %s75, %s91
      %p93 = scmp.eq.s32.totalorder %s27, 0
      %p94 = por %p92, %p93
      %s95 = ssub.s32 %s28, %s40
      %s96 = ssub.s32 %s29, %s36
      %s97 = sor.u32 %s95, %s96
      %p98 = scmp.eq.s32.totalorder %s97, 0
      %s100 = sadd.s32 %s99, 1
      %s101 = scalar_select %p98, %s99, %s100
      %p104 = pneg %p98
      %p105 = scmp.eq.s32.totalorder %s21, 1
      %p106 = por %p104, %p105
      %p107 = scmp.ne.s32.totalorder %s99, %s102
      %p108 = scmp.eq.s32.totalorder %s21, 0
      %p109 = por %p107, %p108
      %p110 = scmp.ne.s32.totalorder %s99, %s102
      %p111 = scmp.eq.s32.totalorder %s26, 1
      %p112 = por %p110, %p111
      %p113 = scmp.ne.s32.totalorder %s102, %s103
      %p114 = scmp.eq.s32.totalorder %s26, 0
      %p115 = por %p113, %p114
      %p116 = scmp.ne.s32.totalorder %s102, %s103
      %p117 = scmp.eq.s32.totalorder %s27, 1
      %p118 = por %p116, %p117
      %p120 = scmp.ne.s32.totalorder %s103, %s119
      %p121 = scmp.eq.s32.totalorder %s27, 0
      %p122 = por %p120, %p121
      %s124 = sadd.s32 %s123, 1
      %p127 = scmp.eq.s32.totalorder %s21, 1
      %p128 = scmp.ne.s32.totalorder %s123, %s125
      %p129 = scmp.eq.s32.totalorder %s21, 0
      %p130 = por %p128, %p129
      %p131 = scmp.ne.s32.totalorder %s123, %s125
      %p132 = scmp.eq.s32.totalorder %s26, 1
      %p133 = por %p131, %p132
      %p134 = scmp.ne.s32.totalorder %s125, %s126
      %p135 = scmp.eq.s32.totalorder %s26, 0
      %p136 = por %p134, %p135
      %p137 = scmp.ne.s32.totalorder %s125, %s126
      %p138 = scmp.eq.s32.totalorder %s27, 1
      %p139 = por %p137, %p138
      %p141 = scmp.ne.s32.totalorder %s126, %s140
      %p142 = scmp.eq.s32.totalorder %s27, 0
      %p143 = por %p141, %p142
      %s145 = sadd.s32 %s144, 1
      %p148 = scmp.eq.s32.totalorder %s21, 1
      %p149 = scmp.ne.s32.totalorder %s144, %s146
      %p150 = scmp.eq.s32.totalorder %s21, 0
      %p151 = por %p149, %p150
      %p152 = scmp.ne.s32.totalorder %s144, %s146
      %p153 = scmp.eq.s32.totalorder %s26, 1
      %p154 = por %p152, %p153
      %p155 = scmp.ne.s32.totalorder %s146, %s147
      %p156 = scmp.eq.s32.totalorder %s26, 0
      %p157 = por %p155, %p156
      %p158 = scmp.ne.s32.totalorder %s146, %s147
      %p159 = scmp.eq.s32.totalorder %s27, 1
      %p160 = por %p158, %p159
      %p162 = scmp.ne.s32.totalorder %s147, %s161
      %p163 = scmp.eq.s32.totalorder %s27, 0
      %p164 = por %p162, %p163
      %s166 = sadd.s32 %s165, 1
      %p169 = scmp.eq.s32.totalorder %s21, 1
      %p170 = scmp.ne.s32.totalorder %s165, %s167
      %p171 = scmp.eq.s32.totalorder %s21, 0
      %p172 = por %p170, %p171
      %p173 = scmp.ne.s32.totalorder %s165, %s167
      %p174 = scmp.eq.s32.totalorder %s26, 1
      %p175 = por %p173, %p174
      %p176 = scmp.ne.s32.totalorder %s167, %s168
      %p177 = scmp.eq.s32.totalorder %s26, 0
      %p178 = por %p176, %p177
      %p179 = scmp.ne.s32.totalorder %s167, %s168
      %p180 = scmp.eq.s32.totalorder %s27, 1
      %p181 = por %p179, %p180
      %p183 = scmp.ne.s32.totalorder %s168, %s182
      %p184 = scmp.eq.s32.totalorder %s27, 0
      %p185 = por %p183, %p184
      %s186 = ssub.s32 %s28, %s40
      %s187 = ssub.s32 %s29, %s36
      %s188 = sor.u32 %s186, %s187
      %p189 = scmp.eq.s32.totalorder %s188, 0
      %s191 = sadd.s32 %s190, 1
      %s192 = scalar_select %p189, %s190, %s191
      %p195 = pneg %p189
      %p196 = scmp.eq.s32.totalorder %s21, 1
      %p197 = por %p195, %p196
      %p198 = scmp.ne.s32.totalorder %s190, %s193
      %p199 = scmp.eq.s32.totalorder %s21, 0
      %p200 = por %p198, %p199
      %p201 = scmp.ne.s32.totalorder %s190, %s193
      %p202 = scmp.eq.s32.totalorder %s26, 1
      %p203 = por %p201, %p202
      %p204 = scmp.ne.s32.totalorder %s193, %s194
      %p205 = scmp.eq.s32.totalorder %s26, 0
      %p206 = por %p204, %p205
      %p207 = scmp.ne.s32.totalorder %s193, %s194
      %p208 = scmp.eq.s32.totalorder %s27, 1
      %p209 = por %p207, %p208
      %p211 = scmp.ne.s32.totalorder %s194, %s210
      %p212 = scmp.eq.s32.totalorder %s27, 0
      %p213 = por %p211, %p212
      %s214 = ssub.s32 %s28, %s40
      %s215 = ssub.s32 %s29, %s36
      %s216 = sor.u32 %s214, %s215
      %p217 = scmp.eq.s32.totalorder %s216, 0
      %s219 = sadd.s32 %s218, 1
      %s220 = scalar_select %p217, %s218, %s219
      %p223 = pneg %p217
      %p224 = scmp.eq.s32.totalorder %s21, 1
      %p225 = por %p223, %p224
      %p226 = scmp.ne.s32.totalorder %s218, %s221
      %p227 = scmp.eq.s32.totalorder %s21, 0
      %p228 = por %p226, %p227
      %p229 = scmp.ne.s32.totalorder %s218, %s221
      %p230 = scmp.eq.s32.totalorder %s26, 1
      %p231 = por %p229, %p230
      %p232 = scmp.ne.s32.totalorder %s221, %s222
      %p233 = scmp.eq.s32.totalorder %s26, 0
      %p234 = por %p232, %p233
      %p235 = scmp.ne.s32.totalorder %s221, %s222
      %p236 = scmp.eq.s32.totalorder %s27, 1
      %p237 = por %p235, %p236
      %p239 = scmp.ne.s32.totalorder %s222, %s238
      %p240 = scmp.eq.s32.totalorder %s27, 0
      %p241 = por %p239, %p240
      %s242 = ssub.s32 %s28, %s40
      %s243 = ssub.s32 %s29, %s36
      %s244 = sor.u32 %s242, %s243
      %p245 = scmp.eq.s32.totalorder %s244, 0
      %s247 = sadd.s32 %s246, 1
      %s248 = scalar_select %p245, %s246, %s247
      %p251 = pneg %p245
      %p252 = scmp.eq.s32.totalorder %s21, 1
      %p253 = por %p251, %p252
      %p254 = scmp.ne.s32.totalorder %s246, %s249
      %p255 = scmp.eq.s32.totalorder %s21, 0
      %p256 = por %p254, %p255
      %p257 = scmp.ne.s32.totalorder %s246, %s249
      %p258 = scmp.eq.s32.totalorder %s26, 1
      %p259 = por %p257, %p258
      %p260 = scmp.ne.s32.totalorder %s249, %s250
      %p261 = scmp.eq.s32.totalorder %s26, 0
      %p262 = por %p260, %p261
      %p263 = scmp.ne.s32.totalorder %s249, %s250
      %p264 = scmp.eq.s32.totalorder %s27, 1
      %p265 = por %p263, %p264
      %p267 = scmp.ne.s32.totalorder %s250, %s266
      %p268 = scmp.eq.s32.totalorder %s27, 0
      %p269 = por %p267, %p268
      %p270 = scmp.le.s32.totalorder 1, %s21
      %p271 = scmp.lt.s32.totalorder %s21, 3
      %p272 = pnand %p270, %p271
      %p273 = pneg %p272
      // Predicated region
      $region9: #{tpu_custom_call.1} parent=5 // pred_check
        _
      $region10: #{tpu_custom_call.1} parent=5 // pred_check_branch
        %275 = sbr.rel (%p272) target = $region12
      $region11: #{tpu_custom_call.1} parent=5 // pred_region
        %s276 = ssub.s32 %s21, 1
        // Predicated region
        $region13: #{tpu_custom_call.1} parent=11 // pred_check
          %p277 = pneg %p136
        $region14: #{tpu_custom_call.1} parent=11 // pred_check_branch
          %279 = sbr.rel (%p277) target = $region16
        $region15: #{tpu_custom_call.1} parent=11 // pred_region
          _
        $region16: #{tpu_custom_call.1} parent=11 // pred_fallthru
          _
        // Predicated region
        $region17: #{tpu_custom_call.1} parent=11 // pred_check
          %p280 = pneg %p157
        $region18: #{tpu_custom_call.1} parent=11 // pred_check_branch
          %282 = sbr.rel (%p280) target = $region20
        $region19: #{tpu_custom_call.1} parent=11 // pred_region
          _
        $region20: #{tpu_custom_call.1} parent=11 // pred_fallthru
          _
        // Predicated region
        $region21: #{tpu_custom_call.1} parent=11 // pred_check
          %p283 = pneg %p178
        $region22: #{tpu_custom_call.1} parent=11 // pred_check_branch
          %285 = sbr.rel (%p283) target = $region24
        $region23: #{tpu_custom_call.1} parent=11 // pred_region
          _
        $region24: #{tpu_custom_call.1} parent=11 // pred_fallthru
          _
      $region12: #{tpu_custom_call.1} parent=5 // pred_fallthru
        _
      %p286 = scmp.lt.s32.totalorder %s21, 2
      // Predicated region
      $region25: #{tpu_custom_call.1} parent=5 // pred_check
        %p287 = pneg %p286
      $region26: #{tpu_custom_call.1} parent=5 // pred_check_branch
        %289 = sbr.rel (%p287) target = $region28
      $region27: #{tpu_custom_call.1} parent=5 // pred_region
        // Predicated region
        $region29: #{tpu_custom_call.1} parent=27 // pred_check
          %p290 = pneg %p55
        $region30: #{tpu_custom_call.1} parent=27 // pred_check_branch
          %292 = sbr.rel (%p290) target = $region32
        $region31: #{tpu_custom_call.1} parent=27 // pred_region
          %p293 = scmp.lt.s32.totalorder %s28, 1
          %s294 = scalar_select %p293, %s28, 1
          %p295 = scmp.lt.s32.totalorder %s29, 0
          %s296 = scalar_select %p295, %s29, 0
          %s297 = sadd.s32 %s296, %s294
          %s298 = smul.addr %s297, 8
          %s299 = scalar_lea.vmem %s0, %s298
        $region32: #{tpu_custom_call.1} parent=27 // pred_fallthru
          _
        // Predicated region
        $region33: #{tpu_custom_call.1} parent=27 // pred_check
          %p300 = pneg %p81
        $region34: #{tpu_custom_call.1} parent=27 // pred_check_branch
          %302 = sbr.rel (%p300) target = $region36
        $region35: #{tpu_custom_call.1} parent=27 // pred_region
          %p303 = scmp.lt.s32.totalorder %s28, 1
          %s304 = scalar_select %p303, %s28, 1
          %s305 = smul.addr %s304, 4
          %s306 = smul.addr %s305, 8
          %s307 = scalar_lea.vmem %s1, %s306
        $region36: #{tpu_custom_call.1} parent=27 // pred_fallthru
          _
        // Predicated region
        $region37: #{tpu_custom_call.1} parent=27 // pred_check
          %p308 = pneg %p109
        $region38: #{tpu_custom_call.1} parent=27 // pred_check_branch
          %310 = sbr.rel (%p308) target = $region40
        $region39: #{tpu_custom_call.1} parent=27 // pred_region
          %p311 = scmp.lt.s32.totalorder %s28, 1
          %s312 = scalar_select %p311, %s28, 1
          %p313 = scmp.lt.s32.totalorder %s29, 0
          %s314 = scalar_select %p313, %s29, 0
          %s315 = sadd.s32 %s314, %s312
          %s316 = smul.addr %s315, 8
          %s317 = scalar_lea.vmem %s2, %s316
        $region40: #{tpu_custom_call.1} parent=27 // pred_fallthru
          _
      $region28: #{tpu_custom_call.1} parent=5 // pred_fallthru
        _
      %p318 = scmp.le.s32.totalorder 1, %s21
      %p319 = scmp.lt.s32.totalorder %s21, 3
      %p320 = pnand %p318, %p319
      %p321 = pneg %p320
      // Predicated region
      $region41: #{tpu_custom_call.1} parent=5 // pred_check
        _
      $region42: #{tpu_custom_call.1} parent=5 // pred_check_branch
        %323 = sbr.rel (%p320) target = $region44
      $region43: #{tpu_custom_call.1} parent=5 // pred_region
        %s324 = ssub.s32 %s21, 1
        %p325 = scmp.lt.s32.totalorder %s30, 1
        %s326 = scalar_select %p325, %s30, 1
        %p327 = scmp.lt.s32.totalorder %s31, 0
        %s328 = scalar_select %p327, %s31, 0
        %s329 = sadd.s32 %s328, %s326
        %s330 = smul.addr %s329, 8
        %s331 = scalar_lea.vmem %s0, %s330
        %p332 = pneg %p61
        %p333 = pneg %p58
        %p334 = scmp.lt.s32.totalorder %s30, 1
        %s335 = scalar_select %p334, %s30, 1
        %s336 = smul.addr %s335, 4
        %s337 = smul.addr %s336, 8
        %s338 = scalar_lea.vmem %s1, %s337
        %p339 = pneg %p87
        %p340 = pneg %p84
        %p341 = scmp.lt.s32.totalorder %s30, 1
        %s342 = scalar_select %p341, %s30, 1
        %p343 = scmp.lt.s32.totalorder %s31, 0
        %s344 = scalar_select %p343, %s31, 0
        %s345 = sadd.s32 %s344, %s342
        %s346 = smul.addr %s345, 8
        %s347 = scalar_lea.vmem %s2, %s346
        %p348 = pneg %p115
        %p349 = pneg %p112
        %p350 = pneg %p136
        %p351 = pneg %p133
        %p352 = pneg %p157
        %p353 = pneg %p154
        %p354 = pneg %p178
        %p355 = pneg %p175
        %p356 = pneg %p206
        %p357 = pneg %p203
        %s358 = sand.u32 %s193, 1
        %s359 = scalar_lea.sflag [#allocation3], %s358
        %s360 = sand.u32 %s193, 1
        %s361 = smul.addr %s360, 8
        %s362 = scalar_lea.vmem [#allocation2], %s361
        %p363 = pneg %p234
        %p364 = pneg %p231
        %s365 = sand.u32 %s26, 1
        %s366 = scalar_lea.sflag [#allocation5], %s365
        %s367 = sand.u32 %s221, 1
        %s368 = scalar_lea.vmem [#allocation4], %s367
        %p369 = pneg %p262
        %p370 = pneg %p259
        %s371 = sand.u32 %s26, 1
        %s372 = scalar_lea.sflag [#allocation5], %s371
        %s373 = sand.u32 %s249, 1
        %s374 = smul.addr %s373, 8
        %s375 = scalar_lea.vmem [#allocation6], %s374
        %p376 = scmp.lt.s32.totalorder %s30, 1
        %s377 = scalar_select %p376, %s30, 1
        %p378 = scmp.lt.s32.totalorder %s31, 0
        %s379 = scalar_select %p378, %s31, 0
        %s380 = sadd.s32 %s379, %s377
        %s381 = smul.addr %s380, 8
        %s382 = scalar_lea.vmem %s0, %s381
        %p383 = scmp.lt.s32.totalorder %s30, 1
        %s384 = scalar_select %p383, %s30, 1
        %s385 = smul.addr %s384, 4
        %s386 = smul.addr %s385, 8
        %s387 = scalar_lea.vmem %s1, %s386
        %p388 = scmp.lt.s32.totalorder %s30, 1
        %s389 = scalar_select %p388, %s30, 1
        %p390 = scmp.lt.s32.totalorder %s31, 0
        %s391 = scalar_select %p390, %s31, 0
        %s392 = sadd.s32 %s391, %s389
        %s393 = smul.addr %s392, 8
        %s394 = scalar_lea.vmem %s2, %s393
        %v395 = vld [vmem:[%s382] sm:$0xff]
        %v396 = vlaneseq
        %v397 = vshrl.u32 %v396, 7
        %v398 = vrot.slane %v395, 4
        %v399 = vmax.f32 %v395, %v398
        %v400 = vrot.slane %v399, 2
        %v401 = vmax.f32 %v399, %v400
        %v402 = vrot.slane %v401, 1
        %v403 = vmax.f32 %v401, %v402
        %vm404 = vcmp.ge.f32.partialorder %v395, %v403
        %v405 = vsel %vm404, %v397, 8
        %v406 = vrot.slane %v405, 4
        %vm407 = vcmp.lt.s32.totalorder %v405, %v406
        %v408 = vsel %vm407, %v405, %v406
        %v409 = vrot.slane %v408, 2
        %vm410 = vcmp.lt.s32.totalorder %v408, %v409
        %v411 = vsel %vm410, %v408, %v409
        %v412 = vrot.slane %v411, 1
        %vm413 = vcmp.lt.s32.totalorder %v411, %v412
        %v414 = vsel %vm413, %v411, %v412
        %vm415 = vcmp.eq.s32.totalorder %v397, %v414
        %v416 = vsel %vm415, 1, 0
        %v417 = vcvt.s32.f32 %v416
        %v418 = vld [vmem:[%s3] sm:$0xff]
        %v419 = vld [vmem:[%s3 + $0x8] sm:$0xff]
        %v420 = vld [vmem:[%s3 + $0x10] sm:$0xff]
        %v421 = vld [vmem:[%s3 + $0x18] sm:$0xff]
        %v422 = vld [vmem:[%s387] sm:$0xff]
        %v423 = vld [vmem:[%s387 + $0x8] sm:$0xff]
        %v424 = vld [vmem:[%s387 + $0x10] sm:$0xff]
        %v425 = vld [vmem:[%s387 + $0x18] sm:$0xff]
        %427 = vset.pattern.permute.xlu0 0
        %428 = vperm.xlu0 %427, %v422
        %v429 = vpop.permute.xlu0 %428
        %432 = vset.pattern.permute.xlu0 0
        %433 = vperm.xlu0 %432, %v423
        %v434 = vpop.permute.xlu0 %433
        %437 = vset.pattern.permute.xlu0 0
        %438 = vperm.xlu0 %437, %v424
        %v439 = vpop.permute.xlu0 %438
        %442 = vset.pattern.permute.xlu0 0
        %443 = vperm.xlu0 %442, %v425
        %v444 = vpop.permute.xlu0 %443
        %vm446 = vcmask 64512
        %v448 = vsel %vm446, %v418, 0
        %v451 = vsel %vm446, %v419, 0
        %v454 = vsel %vm446, %v420, 0
        %v457 = vsel %vm446, %v421, 0
        %459 = vmatprep.subr.mxu0 0.0
        %460 = vmatpush1.msra.mxu0 %v417
        %461 = vmatprep.subr.mxu0 0.0
        %462 = vmatpush1.msra.mxu0 0.0
        %463 = vmatprep.subr.mxu0 0.0
        %464 = vmatpush1.msra.mxu0 0.0
        %465 = vmatprep.subr.mxu0 0.0
        %466 = vmatpush1.msra.mxu0 0.0
        %467 = vmatprep.subr.mxu0 0.0
        %468 = vmatpush1.msra.mxu0 0.0
        %469 = vmatprep.subr.mxu0 0.0
        %470 = vmatpush1.msra.mxu0 0.0
        %471 = vmatprep.subr.mxu0 0.0
        %472 = vmatpush1.msra.mxu0 0.0
        %473 = vmatprep.subr.mxu0 0.0
        %474 = vmatpush1.msra.mxu0 0.0
        %475 = vmatprep.subr.mxu0 0.0
        %476 = vmatpush1.msra.mxu0 0.0
        %477 = vmatprep.subr.mxu0 0.0
        %478 = vmatpush1.msra.mxu0 0.0
        %479 = vmatprep.subr.mxu0 0.0
        %480 = vmatpush1.msra.mxu0 0.0
        %481 = vmatprep.subr.mxu0 0.0
        %482 = vmatpush1.msra.mxu0 0.0
        %483 = vmatprep.subr.mxu0 0.0
        %484 = vmatpush1.msra.mxu0 0.0
        %485 = vmatprep.subr.mxu0 0.0
        %486 = vmatpush1.msra.mxu0 0.0
        %487 = vmatprep.subr.mxu0 0.0
        %488 = vmatpush1.msra.mxu0 0.0
        %489 = vmatprep.subr.mxu0 0.0
        %490 = vmatpush1.msra.mxu0 0.0
        %491 = vmatprep.subr.mxu0 0.0
        %492 = vmatpush1.msra.mxu0 0.0
        %493 = vmatprep.subr.mxu0 0.0
        %494 = vmatpush1.msra.mxu0 0.0
        %495 = vmatprep.subr.mxu0 0.0
        %496 = vmatpush1.msra.mxu0 0.0
        %497 = vmatprep.subr.mxu0 0.0
        %498 = vmatpush1.msra.mxu0 0.0
        %499 = vmatprep.subr.mxu0 0.0
        %500 = vmatpush1.msra.mxu0 0.0
        %501 = vmatprep.subr.mxu0 0.0
        %502 = vmatpush1.msra.mxu0 0.0
        %503 = vmatprep.subr.mxu0 0.0
        %504 = vmatpush1.msra.mxu0 0.0
        %505 = vmatprep.subr.mxu0 0.0
        %506 = vmatpush1.msra.mxu0 0.0
        %507 = vmatprep.subr.mxu0 0.0
        %508 = vmatpush1.msra.mxu0 0.0
        %509 = vmatprep.subr.mxu0 0.0
        %510 = vmatpush1.msra.mxu0 0.0
        %511 = vmatprep.subr.mxu0 0.0
        %512 = vmatpush1.msra.mxu0 0.0
        %513 = vmatprep.subr.mxu0 0.0
        %514 = vmatpush1.msra.mxu0 0.0
        %515 = vmatprep.subr.mxu0 0.0
        %516 = vmatpush1.msra.mxu0 0.0
        %517 = vmatprep.subr.mxu0 0.0
        %518 = vmatpush1.msra.mxu0 0.0
        %519 = vmatprep.subr.mxu0 0.0
        %520 = vmatpush1.msra.mxu0 0.0
        %521 = vmatprep.subr.mxu0 0.0
        %522 = vmatpush1.msra.mxu0 0.0
        %523 = vmatprep.mubr.f32.mxu0 0.0
        %524 = vmatmul.mubr.f32.gmra.mrb[0].mxu0 %v448
        %v525 = vpop.f32.mrb[0].mxu0
        %v526 = vadd.f32 %v429, %v525
        %v527 = vpop.f32.mrb[0].mxu0
        %528 = vmatprep.mubr.f32.mxu0 0.0
        %529 = vmatmul.mubr.f32.gmra.mrb[0].mxu0 %v451
        %v530 = vpop.f32.mrb[0].mxu0
        %v531 = vadd.f32 %v434, %v530
        %v532 = vpop.f32.mrb[0].mxu0
        %533 = vmatprep.mubr.f32.mxu0 0.0
        %534 = vmatmul.mubr.f32.gmra.mrb[0].mxu0 %v454
        %v535 = vpop.f32.mrb[0].mxu0
        %v536 = vadd.f32 %v439, %v535
        %v537 = vpop.f32.mrb[0].mxu0
        %538 = vmatprep.mubr.f32.mxu0 0.0
        %539 = vmatmul.mubr.f32.gmra.mrb[0].mxu0 %v457
        %v540 = vpop.f32.mrb[0].mxu0
        %v541 = vadd.f32 %v444, %v540
        %v542 = vpop.f32.mrb[0].mxu0
        %543 = vdwg.mxu0
        %v544 = vld [vmem:[%s4] sm:$0xff]
        %v545 = vld [vmem:[%s5] sm:$0xff]
        %547 = vset.pattern.permute.xlu0 0
        %548 = vperm.xlu0 %547, %v545
        %v549 = vpop.permute.xlu0 %548
        %vm551 = vcmask 261120
        %v553 = vsel %vm551, %v544, 0
        %555 = vmatprep.subr.mxu0 0.0
        %556 = vmatpush1.msra.mxu0 %v526
        %557 = vmatprep.subr.mxu0 0.0
        %558 = vmatpush1.msra.mxu0 %v531
        %559 = vmatprep.subr.mxu0 0.0
        %560 = vmatpush1.msra.mxu0 %v536
        %561 = vmatprep.subr.mxu0 0.0
        %562 = vmatpush1.msra.mxu0 %v541
        %563 = vmatprep.subr.mxu0 0.0
        %564 = vmatpush1.msra.mxu0 0.0
        %565 = vmatprep.subr.mxu0 0.0
        %566 = vmatpush1.msra.mxu0 0.0
        %567 = vmatprep.subr.mxu0 0.0
        %568 = vmatpush1.msra.mxu0 0.0
        %569 = vmatprep.subr.mxu0 0.0
        %570 = vmatpush1.msra.mxu0 0.0
        %571 = vmatprep.subr.mxu0 0.0
        %572 = vmatpush1.msra.mxu0 0.0
        %573 = vmatprep.subr.mxu0 0.0
        %574 = vmatpush1.msra.mxu0 0.0
        %575 = vmatprep.subr.mxu0 0.0
        %576 = vmatpush1.msra.mxu0 0.0
        %577 = vmatprep.subr.mxu0 0.0
        %578 = vmatpush1.msra.mxu0 0.0
        %579 = vmatprep.subr.mxu0 0.0
        %580 = vmatpush1.msra.mxu0 0.0
        %581 = vmatprep.subr.mxu0 0.0
        %582 = vmatpush1.msra.mxu0 0.0
        %583 = vmatprep.subr.mxu0 0.0
        %584 = vmatpush1.msra.mxu0 0.0
        %585 = vmatprep.subr.mxu0 0.0
        %586 = vmatpush1.msra.mxu0 0.0
        %587 = vmatprep.subr.mxu0 0.0
        %588 = vmatpush1.msra.mxu0 0.0
        %589 = vmatprep.subr.mxu0 0.0
        %590 = vmatpush1.msra.mxu0 0.0
        %591 = vmatprep.subr.mxu0 0.0
        %592 = vmatpush1.msra.mxu0 0.0
        %593 = vmatprep.subr.mxu0 0.0
        %594 = vmatpush1.msra.mxu0 0.0
        %595 = vmatprep.subr.mxu0 0.0
        %596 = vmatpush1.msra.mxu0 0.0
        %597 = vmatprep.subr.mxu0 0.0
        %598 = vmatpush1.msra.mxu0 0.0
        %599 = vmatprep.subr.mxu0 0.0
        %600 = vmatpush1.msra.mxu0 0.0
        %601 = vmatprep.subr.mxu0 0.0
        %602 = vmatpush1.msra.mxu0 0.0
        %603 = vmatprep.subr.mxu0 0.0
        %604 = vmatpush1.msra.mxu0 0.0
        %605 = vmatprep.subr.mxu0 0.0
        %606 = vmatpush1.msra.mxu0 0.0
        %607 = vmatprep.subr.mxu0 0.0
        %608 = vmatpush1.msra.mxu0 0.0
        %609 = vmatprep.subr.mxu0 0.0
        %610 = vmatpush1.msra.mxu0 0.0
        %611 = vmatprep.subr.mxu0 0.0
        %612 = vmatpush1.msra.mxu0 0.0
        %613 = vmatprep.subr.mxu0 0.0
        %614 = vmatpush1.msra.mxu0 0.0
        %615 = vmatprep.subr.mxu0 0.0
        %616 = vmatpush1.msra.mxu0 0.0
        %617 = vmatprep.subr.mxu0 0.0
        %618 = vmatpush1.msra.mxu0 0.0
        %619 = vmatprep.mubr.f32.mxu0 0.0
        %620 = vmatmul.mubr.f32.gmra.mrb[0].mxu0 %v553
        %v621 = vpop.f32.mrb[0].mxu0
        %v622 = vadd.f32 %v549, %v621
        %v623 = vpop.f32.mrb[0].mxu0
        %624 = vdwg.mxu0
        %vm625 = vcmp.eq.s32.totalorder %v397, 7
        %v626 = vsel %vm625, -inf, %v622
        %v627 = vrot.slane %v626, 4
        %v628 = vmax.f32 %v626, %v627
        %v629 = vrot.slane %v628, 2
        %v630 = vmax.f32 %v628, %v629
        %v631 = vrot.slane %v630, 1
        %v632 = vmax.f32 %v630, %v631
        %v633 = vsub.f32 %v626, %v632
        %v634 = vmul.f32 %v633, 1.442695
        %v635 = vpow.pop %v634
        %v636 = vrot.slane %v635, 4
        %v637 = vadd.f32 %v635, %v636
        %v638 = vrot.slane %v637, 2
        %v639 = vadd.f32 %v637, %v638
        %v640 = vrot.slane %v639, 1
        %v641 = vadd.f32 %v639, %v640
        %v642 = vlog2.pop %v641
        %v643 = vmul.f32 %v642, 0.6931472
        %v644 = vsub.f32 %v633, %v643
        %v645 = vsel %vm625, -70.0, %v644
        %v646 = vmax.f32 %v645, -70.0
        %v647 = vmin.f32 %v646, 0.0
        %648 = vst [vmem:[%s362] sm:$0xff] %v647
        %v649 = vrcp.pop %v641
        %v650 = vmul.f32 %v635, %v649
        %v651 = vsub.f32 %v647, %v395
        %v652 = vmul.f32 %v650, %v651
        %v653 = vrot.slane %v652, 4
        %v654 = vadd.f32 %v652, %v653
        %v655 = vrot.slane %v654, 2
        %v656 = vadd.f32 %v654, %v655
        %v657 = vrot.slane %v656, 1
        %v658 = vadd.f32 %v656, %v657
        %659 = vst [vmem:[%s368] sm:$0x1] %v658
        %v660 = vld [vmem:[%s394] sm:$0xff]
        %v661 = vadd.f32 %v660, %v647
        %v662 = vrot.slane %v661, 4
        %v663 = vmax.f32 %v661, %v662
        %v664 = vrot.slane %v663, 2
        %v665 = vmax.f32 %v663, %v664
        %v666 = vrot.slane %v665, 1
        %v667 = vmax.f32 %v665, %v666
        %vm668 = vcmp.ge.f32.partialorder %v661, %v667
        %v669 = vsel %vm668, %v397, 8
        %v670 = vrot.slane %v669, 4
        %vm671 = vcmp.lt.s32.totalorder %v669, %v670
        %v672 = vsel %vm671, %v669, %v670
        %v673 = vrot.slane %v672, 2
        %vm674 = vcmp.lt.s32.totalorder %v672, %v673
        %v675 = vsel %vm674, %v672, %v673
        %v676 = vrot.slane %v675, 1
        %vm677 = vcmp.lt.s32.totalorder %v675, %v676
        %v678 = vsel %vm677, %v675, %v676
        %vm679 = vcmp.eq.s32.totalorder %v397, %v678
        %v680 = vsel %vm679, 0.0, -69.07755
        %681 = vst [vmem:[%s375] sm:$0xff] %v680
        %s682 = sand.u32 %s193, 1
        %s683 = scalar_lea.sflag [#allocation3], %s682
        %s684 = sand.u32 %s193, 1
        %s685 = smul.addr %s684, 8
        %s686 = scalar_lea.vmem [#allocation2], %s685
        %s687 = sand.u32 %s26, 1
        %s688 = scalar_lea.sflag [#allocation5], %s687
        %s689 = sand.u32 %s221, 1
        %s690 = scalar_lea.vmem [#allocation4], %s689
        %s691 = sand.u32 %s26, 1
        %s692 = scalar_lea.sflag [#allocation5], %s691
        %s693 = sand.u32 %s249, 1
        %s694 = smul.addr %s693, 8
        %s695 = scalar_lea.vmem [#allocation6], %s694
        // Predicated region
        $region45: #{tpu_custom_call.1} parent=43 // pred_check
          %p696 = pneg %p203
        $region46: #{tpu_custom_call.1} parent=43 // pred_check_branch
          %698 = sbr.rel (%p696) target = $region48
        $region47: #{tpu_custom_call.1} parent=43 // pred_region
          %s700 = ssub.s32 128, 128
          %701 = vsyncadd %s683, %s700
          %s702 = sadd.s32 %s31, %s30
          %s703 = smul.addr %s702, 128
          %s704 = scalar_lea.hbm %s6, %s703
          %s706 = sshll.u32 %s686, 4
          %s707 = int_to_ptr.vmem [resolvable:$true] %s706
          %709 = dma.vmem_to_hbm [thread:$0]  %s707, 128, %s704, %s683
        $region48: #{tpu_custom_call.1} parent=43 // pred_fallthru
          _
        // Predicated region
        $region49: #{tpu_custom_call.1} parent=43 // pred_check
          %p710 = pneg %p231
        $region50: #{tpu_custom_call.1} parent=43 // pred_check_branch
          %712 = sbr.rel (%p710) target = $region52
        $region51: #{tpu_custom_call.1} parent=43 // pred_region
          %s714 = ssub.s32 16, 16
          %715 = vsyncadd %s688, %s714
          %s716 = sadd.s32 %s31, %s30
          %s717 = smul.addr %s716, 16
          %s718 = scalar_lea.hbm %s7, %s717
          %s720 = sshll.u32 %s690, 4
          %s721 = int_to_ptr.vmem [resolvable:$true] %s720
          %723 = dma.vmem_to_hbm [thread:$0]  %s721, 16, %s718, %s688
        $region52: #{tpu_custom_call.1} parent=43 // pred_fallthru
          _
        // Predicated region
        $region53: #{tpu_custom_call.1} parent=43 // pred_check
          %p724 = pneg %p259
        $region54: #{tpu_custom_call.1} parent=43 // pred_check_branch
          %726 = sbr.rel (%p724) target = $region56
        $region55: #{tpu_custom_call.1} parent=43 // pred_region
          %s728 = ssub.s32 128, 128
          %729 = vsyncadd %s692, %s728
          %s730 = sadd.s32 %s31, %s30
          %s731 = smul.addr %s730, 128
          %s732 = scalar_lea.hbm %s8, %s731
          %s734 = sshll.u32 %s695, 4
          %s735 = int_to_ptr.vmem [resolvable:$true] %s734
          %737 = dma.vmem_to_hbm [thread:$0]  %s735, 128, %s732, %s692
        $region56: #{tpu_custom_call.1} parent=43 // pred_fallthru
          _
      $region44: #{tpu_custom_call.1} parent=5 // pred_fallthru
        _
      %p738 = scmp.le.s32.totalorder 2, %s21
      // Predicated region
      $region57: #{tpu_custom_call.1} parent=5 // pred_check
        %p739 = pneg %p738
      $region58: #{tpu_custom_call.1} parent=5 // pred_check_branch
        %741 = sbr.rel (%p739) target = $region60
      $region59: #{tpu_custom_call.1} parent=5 // pred_region
        %s742 = ssub.s32 %s21, 2
        // Predicated region
        $region61: #{tpu_custom_call.1} parent=59 // pred_check
          %p743 = pneg %p209
        $region62: #{tpu_custom_call.1} parent=59 // pred_check_branch
          %745 = sbr.rel (%p743) target = $region64
        $region63: #{tpu_custom_call.1} parent=59 // pred_region
          %s746 = sand.u32 %s194, 1
          %s747 = scalar_lea.sflag [#allocation3], %s746
          %s748 = sand.u32 %s194, 1
          %s749 = smul.addr %s748, 8
          %s750 = scalar_lea.vmem [#allocation2], %s749
          %751 = dma.done %s747, 128
        $region64: #{tpu_custom_call.1} parent=59 // pred_fallthru
          _
        // Predicated region
        $region65: #{tpu_custom_call.1} parent=59 // pred_check
          %p752 = pneg %p237
        $region66: #{tpu_custom_call.1} parent=59 // pred_check_branch
          %754 = sbr.rel (%p752) target = $region68
        $region67: #{tpu_custom_call.1} parent=59 // pred_region
          %s755 = sand.u32 %s27, 1
          %s756 = scalar_lea.sflag [#allocation5], %s755
          %s757 = sand.u32 %s222, 1
          %s758 = scalar_lea.vmem [#allocation4], %s757
          %759 = dma.done %s756, 16
        $region68: #{tpu_custom_call.1} parent=59 // pred_fallthru
          _
        // Predicated region
        $region69: #{tpu_custom_call.1} parent=59 // pred_check
          %p760 = pneg %p265
        $region70: #{tpu_custom_call.1} parent=59 // pred_check_branch
          %762 = sbr.rel (%p760) target = $region72
        $region71: #{tpu_custom_call.1} parent=59 // pred_region
          %s763 = sand.u32 %s27, 1
          %s764 = scalar_lea.sflag [#allocation5], %s763
          %s765 = sand.u32 %s250, 1
          %s766 = smul.addr %s765, 8
          %s767 = scalar_lea.vmem [#allocation6], %s766
          %768 = dma.done %s764, 128
        $region72: #{tpu_custom_call.1} parent=59 // pred_fallthru
          _
      $region60: #{tpu_custom_call.1} parent=5 // pred_fallthru
        _
    $region6: #{tpu_custom_call.1} parent=1 // loop_footer
      %s25 = sadd.s32 1, %s21
    $region7: #{tpu_custom_call.1} parent=1 // loop_footer_branch
      %20 = sbr.rel target = $region3
    $region8: #{tpu_custom_call.1} parent=1 // loop_exit
      _
    %769 = vsyncpa [#allocation3], 1
    %s770 = scalar_lea.sflag [#allocation3], 1
    %771 = vsyncpa %s770, 1
    %772 = vsyncpa [#allocation5], 1
    %s773 = scalar_lea.sflag [#allocation5], 1
    %774 = vsyncpa %s773, 1

</llo_original>
